<compile_context>
chip_gen: v7x
topology: tpu7x:2x2x1
jax: 0.10.0
libtpu: 0.0.40
codegen_flags: <defaults>
</compile_context>

<pallas_src>
import functools

import jax
import jax.numpy as jnp
from jax.experimental import pallas as pl
from jax.experimental.pallas import tpu as pltpu

# --- deterministic "module parameters" (from __init__ defaults) ------------
ALPHA = 0.5          # soft/hard balance
GAMMA = 2.0          # focal focusing parameter (initial_gamma, unadapted)
TEMPERATURE = 4.0    # distillation temperature
FOCAL_ALPHA = 1.0    # class_weights=None -> scalar alpha 1.0 inside FocalLoss
IGNORE_INDEX = -100

# --- VMEM sizing knobs -------------------------------------------------------
_MAX_BATCH_TILE = 1024
_F32_TEMPS_PER_ROW = 6                    # live (TB, C) f32 temporaries in body
_VMEM_HEADROOM_BYTES = 4 * 1024 * 1024
_VMEM_LIMIT_CAP_BYTES = 96 * 1024 * 1024  # v5e/v6e ceiling
_FALLBACK_VMEM_BYTES = 64 * 1024 * 1024   # assume v7x-sized VMEM if query fails


def _round_up(x, m):
    return ((x + m - 1) // m) * m


def _choose_tiling(b, c, in_itemsize):
    """Generation-aware (batch_tile, vmem_limit_bytes).

    Budgets BOTH the native-dtype streaming double-buffers (2 inputs x 2
    pipeline buffers) and the ~6 live (TB, C) f32 temporaries inside the
    kernel body, so the tile stays spill-free on v7x (64 MiB VMEM) while
    exploiting the headroom on v5e/v6e (128 MiB).
    """
    try:
        vmem_phys = int(pltpu.get_tpu_info().vmem_capacity_bytes)
    except Exception:  # query unavailable -> conservative (v7x-sized) default
        vmem_phys = _FALLBACK_VMEM_BYTES
    vmem_limit = min((vmem_phys * 3) // 4, _VMEM_LIMIT_CAP_BYTES)

    per_row = 2 * 2 * c * in_itemsize + _F32_TEMPS_PER_ROW * c * 4 + 256
    budget = max(vmem_limit - _VMEM_HEADROOM_BYTES, 1 << 20)
    tb = budget // max(per_row, 1)
    tb = min(tb, _MAX_BATCH_TILE, _round_up(b, 8))
    tb = max(8, (tb // 8) * 8)
    return int(tb), int(vmem_limit)


def _focal_distill_kernel(logits_ref, labels_ref, teacher_ref, out_ref, *,
                          gamma, temperature, focal_alpha, ignore_index,
                          batch, batch_tile, mask_rows):
    """One batch tile -> per-tile (hard_focal_sum, kl_sum) partials written to
    a lane-dense (8,128) output block (sublane 0 = hard, sublane 1 = KL)."""
    # Upcast only after the tile is in VMEM (inputs may arrive as bf16).
    logits = logits_ref[...].astype(jnp.float32)      # (TB, C)
    teacher = teacher_ref[...].astype(jnp.float32)    # (TB, C)
    labels = labels_ref[...]                          # (TB, 1) int32
    tb, c = logits.shape

    valid = labels != ignore_index                    # (TB, 1) bool

    if mask_rows:
        # Ragged last tile: rows >= batch are out-of-bounds garbage reads.
        # Sanitize them to zeros (exactly neutral for both terms: masked CE,
        # uniform-vs-uniform KL == 0) instead of padding the big HBM tensors.
        row_ids = (pl.program_id(0) * batch_tile
                   + jax.lax.broadcasted_iota(jnp.int32, (tb, 1), 0))
        row_ok = row_ids < batch                      # (TB, 1) bool
        logits = jnp.where(row_ok, logits, 0.0)
        teacher = jnp.where(row_ok, teacher, 0.0)
        valid = jnp.logical_and(valid, row_ok)

    valid_f = valid.astype(jnp.float32)

    # ---- hard focal-CE term (per row) --------------------------------------
    class_ids = jax.lax.broadcasted_iota(jnp.int32, (tb, c), 1)
    onehot = (class_ids == labels).astype(jnp.float32)            # (TB, C)
    m = jnp.max(logits, axis=1, keepdims=True)                    # (TB, 1)
    lse = m + jnp.log(jnp.sum(jnp.exp(logits - m), axis=1, keepdims=True))
    tgt_logit = jnp.sum(onehot * logits, axis=1, keepdims=True)   # (TB, 1)
    ce = (lse - tgt_logit) * valid_f                  # 0 on ignored / padded rows

    p_t = jnp.exp(-ce)
    base = jnp.maximum(1.0 - p_t, 0.0)   # clamp: rounding can give p_t > 1
    if gamma == 2.0:
        focal_w = base * base            # avoid exp(g*log(x)) EUP pair
    elif gamma == 1.0:
        focal_w = base
    else:
        focal_w = jnp.power(base, gamma)
    hard_rows = focal_alpha * focal_w * ce            # (TB, 1)

    # ---- soft KL term (per row) ---------------------------------------------
    inv_t = 1.0 / temperature
    s_shift = logits * inv_t - m * inv_t              # reuse student row max
    log_p_s = s_shift - jnp.log(jnp.sum(jnp.exp(s_shift), axis=1, keepdims=True))

    t = teacher * inv_t
    mt = jnp.max(t, axis=1, keepdims=True)
    t_shift = t - mt
    exp_t = jnp.exp(t_shift)                          # reused below -> no 4th exp
    sum_t = jnp.sum(exp_t, axis=1, keepdims=True)
    log_p_t = t_shift - jnp.log(sum_t)
    p_teacher = exp_t * (1.0 / sum_t)                 # exact divide (1e-5 safe)

    kl_rows = jnp.sum(p_teacher * (log_p_t - log_p_s), axis=1, keepdims=True)

    # ---- per-tile partials -> lane-dense output block -----------------------
    hard_partial = jnp.sum(hard_rows)
    kl_partial = jnp.sum(kl_rows)
    sub = jax.lax.broadcasted_iota(jnp.int32, (8, 128), 0)
    blk = jnp.where(sub == 0, hard_partial,
                    jnp.where(sub == 1, kl_partial, 0.0))
    out_ref[0] = blk


def adaptive_focal_distillation_loss(student_logits, hard_labels,
                                     teacher_soft_labels,
                                     alpha=ALPHA, gamma=GAMMA,
                                     temperature=TEMPERATURE,
                                     focal_alpha=FOCAL_ALPHA,
                                     ignore_index=IGNORE_INDEX,
                                     batch_tile=None):
    """Returns (total_loss, hard_focal_loss, soft_kl_loss) as f32 scalars."""
    b, c = student_logits.shape

    in_itemsize = max(jnp.dtype(student_logits.dtype).itemsize,
                      jnp.dtype(teacher_soft_labels.dtype).itemsize)
    auto_tb, vmem_limit = _choose_tiling(b, c, in_itemsize)
    tb = auto_tb if batch_tile is None else max(8, _round_up(int(batch_tile), 8))

    n_tiles = (b + tb - 1) // tb
    mask_rows = (b % tb) != 0

    labels_2d = hard_labels.astype(jnp.int32).reshape(b, 1)

    kernel = functools.partial(
        _focal_distill_kernel,
        gamma=float(gamma), temperature=float(temperature),
        focal_alpha=float(focal_alpha), ignore_index=int(ignore_index),
        batch=int(b), batch_tile=int(tb), mask_rows=bool(mask_rows))

    cost = pl.CostEstimate(
        flops=int(14 * b * c),
        transcendentals=int(3 * b * c + 4 * b),   # 3 full-tile exp passes
        bytes_accessed=int(
            b * c * (jnp.dtype(student_logits.dtype).itemsize
                     + jnp.dtype(teacher_soft_labels.dtype).itemsize)
            + b * 4 + n_tiles * 8 * 128 * 4),
    )

    partials = pl.pallas_call(
        kernel,
        out_shape=jax.ShapeDtypeStruct((n_tiles, 8, 128), jnp.float32),
        grid_spec=pltpu.PrefetchScalarGridSpec(
            num_scalar_prefetch=0,
            grid=(n_tiles,),
            in_specs=[
                pl.BlockSpec((tb, c), lambda i: (i, 0)),
                pl.BlockSpec((tb, 1), lambda i: (i, 0)),
                pl.BlockSpec((tb, c), lambda i: (i, 0)),
            ],
            out_specs=pl.BlockSpec((1, 8, 128), lambda i: (i, 0, 0)),
        ),
        compiler_params=pltpu.CompilerParams(
            dimension_semantics=("parallel",),   # independent tiles -> both TCs on v7x
            vmem_limit_bytes=vmem_limit,
        ),
        cost_estimate=cost,
    )(student_logits, labels_2d, teacher_soft_labels)

    # Tiny wrapper-side epilogue on n_tiles scalars.
    hard_sum = jnp.sum(partials[:, 0, 0])
    kl_sum = jnp.sum(partials[:, 1, 0])

    inv_b = 1.0 / float(b)   # mean over FULL batch (reduction='none' CE + .mean())
    hard_loss = hard_sum * inv_b
    soft_loss = kl_sum * inv_b * (float(temperature) ** 2)
    total = (1.0 - float(alpha)) * hard_loss + float(alpha) * soft_loss
    return total, hard_loss, soft_loss


def _reference(student_logits, hard_labels, teacher_soft_labels):
    """Pure-JAX reference mirroring the PyTorch forward."""
    logits = student_logits.astype(jnp.float32)
    teacher = teacher_soft_labels.astype(jnp.float32)
    B, _ = logits.shape
    valid = (hard_labels != IGNORE_INDEX)
    log_p = jax.nn.log_softmax(logits, axis=1)
    safe_labels = jnp.where(valid, hard_labels, 0)
    ce = -jnp.take_along_axis(log_p, safe_labels[:, None], axis=1)[:, 0]
    ce = jnp.where(valid, ce, 0.0)
    p_t = jnp.exp(-ce)
    hard = jnp.mean(FOCAL_ALPHA * (1.0 - p_t) ** GAMMA * ce)
    log_s = jax.nn.log_softmax(logits / TEMPERATURE, axis=1)
    p_teach = jax.nn.softmax(teacher / TEMPERATURE, axis=1)
    soft = jnp.sum(p_teach * (jnp.log(p_teach) - log_s)) / B * TEMPERATURE ** 2
    total = (1.0 - ALPHA) * hard + ALPHA * soft
    return total, hard, soft


if __name__ == "__main__":
    key = jax.random.PRNGKey(0)
    k1, k2, k3, k4, k5, k6, k7, k8, k9 = jax.random.split(key, 9)

    # --- test 1: small single-tile case --------------------------------------
    B, C = 8, 16
    student_logits = jax.random.normal(k1, (B, C), dtype=jnp.float32) * 2.0
    teacher_soft_labels = jax.random.normal(k2, (B, C), dtype=jnp.float32) * 2.0
    hard_labels = jax.random.randint(k3, (B,), 0, C, dtype=jnp.int32)

    total, hard, soft = adaptive_focal_distillation_loss(
        student_logits, hard_labels, teacher_soft_labels)
    jax.block_until_ready((total, hard, soft))

    rt, rh, rs = _reference(student_logits, hard_labels, teacher_soft_labels)
    assert jnp.allclose(total, rt, rtol=1e-5, atol=1e-5), (total, rt)
    assert jnp.allclose(hard, rh, rtol=1e-5, atol=1e-5), (hard, rh)
    assert jnp.allclose(soft, rs, rtol=1e-5, atol=1e-5), (soft, rs)

    # --- test 2: multi-tile ragged grid (no padding) + ignore_index row ------
    B2, C2 = 20, 16
    sl2 = jax.random.normal(k4, (B2, C2), dtype=jnp.float32) * 2.0
    ts2 = jax.random.normal(k5, (B2, C2), dtype=jnp.float32) * 2.0
    hl2 = jax.random.randint(k6, (B2,), 0, C2, dtype=jnp.int32)
    hl2 = hl2.at[3].set(IGNORE_INDEX)

    t2, h2, s2 = adaptive_focal_distillation_loss(
        sl2, hl2, ts2, batch_tile=8)   # grid=(3,), last tile ragged (4 masked rows)
    jax.block_until_ready((t2, h2, s2))

    rt2, rh2, rs2 = _reference(sl2, hl2, ts2)
    assert jnp.allclose(t2, rt2, rtol=1e-5, atol=1e-5), (t2, rt2)
    assert jnp.allclose(h2, rh2, rtol=1e-5, atol=1e-5), (h2, rh2)
    assert jnp.allclose(s2, rs2, rtol=1e-5, atol=1e-5), (s2, rs2)

    # --- test 3: native bf16 streaming (in-kernel upcast) ---------------------
    B3, C3 = 16, 24
    sl3 = (jax.random.normal(k7, (B3, C3), dtype=jnp.float32) * 2.0).astype(jnp.bfloat16)
    ts3 = (jax.random.normal(k8, (B3, C3), dtype=jnp.float32) * 2.0).astype(jnp.bfloat16)
    hl3 = jax.random.randint(k9, (B3,), 0, C3, dtype=jnp.int32)

    t3, h3, s3 = adaptive_focal_distillation_loss(sl3, hl3, ts3)
    jax.block_until_ready((t3, h3, s3))

    rt3, rh3, rs3 = _reference(sl3, hl3, ts3)
    assert jnp.allclose(t3, rt3, rtol=1e-4, atol=1e-4), (t3, rt3)
    assert jnp.allclose(h3, rh3, rtol=1e-4, atol=1e-4), (h3, rh3)
    assert jnp.allclose(s3, rs3, rtol=1e-4, atol=1e-4), (s3, rs3)

    print("KERNEL_OK")
</pallas_src>

<mosaic_0001>
module attributes {stable_mosaic.version = 11 : i64} {
  func.func @_focal_distill_kernel(%arg0: i32, %arg1: memref<8x16xf32, #tpu.memory_space<vmem>>, %arg2: memref<8x1xi32, #tpu.memory_space<vmem>>, %arg3: memref<8x16xf32, #tpu.memory_space<vmem>>, %arg4: memref<1x8x128xf32, #tpu.memory_space<vmem>>) attributes {dimension_semantics = [#tpu.dimension_semantics<parallel>], iteration_bounds = array<i64: 1>, scalar_prefetch = 0 : i64, scratch_operands = 0 : i64, tpu.core_type = #tpu.core_type<tc>, window_params = [{transform_indices = @transform_0, window_bounds = array<i64: 8, 16>}, {transform_indices = @transform_1, window_bounds = array<i64: 8, 1>}, {transform_indices = @transform_2, window_bounds = array<i64: 8, 16>}, {transform_indices = @transform_3, window_bounds = array<i64: 1, 8, 128>}]} {
    %c0 = arith.constant 0 : index
    %c0_0 = arith.constant 0 : index
    %0 = vector.load %arg1[%c0, %c0_0] : memref<8x16xf32, #tpu.memory_space<vmem>>, vector<8x16xf32>
    %c0_1 = arith.constant 0 : index
    %c0_2 = arith.constant 0 : index
    %1 = vector.load %arg3[%c0_1, %c0_2] : memref<8x16xf32, #tpu.memory_space<vmem>>, vector<8x16xf32>
    %c0_3 = arith.constant 0 : index
    %c0_4 = arith.constant 0 : index
    %2 = vector.load %arg2[%c0_3, %c0_4] : memref<8x1xi32, #tpu.memory_space<vmem>>, vector<8x1xi32>
    %c-100_i32 = arith.constant -100 : i32
    %3 = vector.broadcast %c-100_i32 : i32 to vector<8x1xi32>
    %4 = arith.cmpi ne, %2, %3 : vector<8x1xi32>
    %5 = arith.extui %4 : vector<8x1xi1> to vector<8x1xi32>
    %6 = arith.sitofp %5 : vector<8x1xi32> to vector<8x1xf32>
    %7 = tpu.iota {dimensions = array<i32: 1>} : vector<8x16xi32>
    %8 = vector.broadcast %2 : vector<8x1xi32> to vector<8x16xi32>
    %9 = arith.cmpi eq, %7, %8 : vector<8x16xi32>
    %10 = arith.extui %9 : vector<8x16xi1> to vector<8x16xi32>
    %11 = arith.sitofp %10 : vector<8x16xi32> to vector<8x16xf32>
    %cst = arith.constant dense<0xFF800000> : vector<8xf32>
    %12 = vector.multi_reduction <maximumf>, %0, %cst [1] : vector<8x16xf32> to vector<8xf32>
    %13 = vector.shape_cast %12 : vector<8xf32> to vector<8x1xf32>
    %14 = vector.broadcast %13 : vector<8x1xf32> to vector<8x16xf32>
    %15 = arith.subf %0, %14 : vector<8x16xf32>
    %16 = math.exp %15 : vector<8x16xf32>
    %cst_5 = arith.constant dense<0.000000e+00> : vector<8xf32>
    %17 = vector.multi_reduction <add>, %16, %cst_5 [1] : vector<8x16xf32> to vector<8xf32>
    %18 = vector.shape_cast %17 : vector<8xf32> to vector<8x1xf32>
    %19 = math.log %18 : vector<8x1xf32>
    %20 = arith.addf %13, %19 : vector<8x1xf32>
    %21 = arith.mulf %11, %0 : vector<8x16xf32>
    %cst_6 = arith.constant dense<0.000000e+00> : vector<8xf32>
    %22 = vector.multi_reduction <add>, %21, %cst_6 [1] : vector<8x16xf32> to vector<8xf32>
    %23 = vector.shape_cast %22 : vector<8xf32> to vector<8x1xf32>
    %24 = arith.subf %20, %23 : vector<8x1xf32>
    %25 = arith.mulf %24, %6 : vector<8x1xf32>
    %cst_7 = arith.constant 0.000000e+00 : f32
    %26 = vector.broadcast %cst_7 : f32 to vector<8x1xf32>
    %27 = arith.subf %26, %25 : vector<8x1xf32>
    %28 = math.exp %27 : vector<8x1xf32>
    %cst_8 = arith.constant 1.000000e+00 : f32
    %29 = vector.broadcast %cst_8 : f32 to vector<8x1xf32>
    %30 = arith.subf %29, %28 : vector<8x1xf32>
    %cst_9 = arith.constant 0.000000e+00 : f32
    %31 = vector.broadcast %cst_9 : f32 to vector<8x1xf32>
    %32 = arith.maximumf %30, %31 : vector<8x1xf32>
    %33 = arith.mulf %32, %32 : vector<8x1xf32>
    %cst_10 = arith.constant 1.000000e+00 : f32
    %34 = vector.broadcast %cst_10 : f32 to vector<8x1xf32>
    %35 = arith.mulf %34, %33 : vector<8x1xf32>
    %36 = arith.mulf %35, %25 : vector<8x1xf32>
    %cst_11 = arith.constant 2.500000e-01 : f32
    %37 = vector.broadcast %cst_11 : f32 to vector<8x16xf32>
    %38 = arith.mulf %0, %37 : vector<8x16xf32>
    %cst_12 = arith.constant 2.500000e-01 : f32
    %39 = vector.broadcast %cst_12 : f32 to vector<8x1xf32>
    %40 = arith.mulf %13, %39 : vector<8x1xf32>
    %41 = vector.broadcast %40 : vector<8x1xf32> to vector<8x16xf32>
    %42 = arith.subf %38, %41 : vector<8x16xf32>
    %43 = math.exp %42 : vector<8x16xf32>
    %cst_13 = arith.constant dense<0.000000e+00> : vector<8xf32>
    %44 = vector.multi_reduction <add>, %43, %cst_13 [1] : vector<8x16xf32> to vector<8xf32>
    %45 = vector.shape_cast %44 : vector<8xf32> to vector<8x1xf32>
    %46 = math.log %45 : vector<8x1xf32>
    %47 = vector.broadcast %46 : vector<8x1xf32> to vector<8x16xf32>
    %48 = arith.subf %42, %47 : vector<8x16xf32>
    %cst_14 = arith.constant 2.500000e-01 : f32
    %49 = vector.broadcast %cst_14 : f32 to vector<8x16xf32>
    %50 = arith.mulf %1, %49 : vector<8x16xf32>
    %cst_15 = arith.constant dense<0xFF800000> : vector<8xf32>
    %51 = vector.multi_reduction <maximumf>, %50, %cst_15 [1] : vector<8x16xf32> to vector<8xf32>
    %52 = vector.shape_cast %51 : vector<8xf32> to vector<8x1xf32>
    %53 = vector.broadcast %52 : vector<8x1xf32> to vector<8x16xf32>
    %54 = arith.subf %50, %53 : vector<8x16xf32>
    %55 = math.exp %54 : vector<8x16xf32>
    %cst_16 = arith.constant dense<0.000000e+00> : vector<8xf32>
    %56 = vector.multi_reduction <add>, %55, %cst_16 [1] : vector<8x16xf32> to vector<8xf32>
    %57 = vector.shape_cast %56 : vector<8xf32> to vector<8x1xf32>
    %58 = math.log %57 : vector<8x1xf32>
    %59 = vector.broadcast %58 : vector<8x1xf32> to vector<8x16xf32>
    %60 = arith.subf %54, %59 : vector<8x16xf32>
    %cst_17 = arith.constant 1.000000e+00 : f32
    %61 = vector.broadcast %cst_17 : f32 to vector<8x1xf32>
    %62 = arith.divf %61, %57 : vector<8x1xf32>
    %63 = vector.broadcast %62 : vector<8x1xf32> to vector<8x16xf32>
    %64 = arith.mulf %55, %63 : vector<8x16xf32>
    %65 = arith.subf %60, %48 : vector<8x16xf32>
    %66 = arith.mulf %64, %65 : vector<8x16xf32>
    %cst_18 = arith.constant dense<0.000000e+00> : vector<8xf32>
    %67 = vector.multi_reduction <add>, %66, %cst_18 [1] : vector<8x16xf32> to vector<8xf32>
    %68 = vector.shape_cast %67 : vector<8xf32> to vector<8x1xf32>
    %69 = vector.shape_cast %36 : vector<8x1xf32> to vector<1x8x1xf32>
    %cst_19 = arith.constant dense<0.000000e+00> : vector<1xf32>
    %70 = vector.multi_reduction <add>, %69, %cst_19 [1, 2] : vector<1x8x1xf32> to vector<1xf32>
    %71 = vector.shape_cast %70 : vector<1xf32> to vector<1x1x1xf32>
    %72 = vector.extract %71[0, 0, 0] : f32 from vector<1x1x1xf32>
    %73 = vector.shape_cast %68 : vector<8x1xf32> to vector<1x8x1xf32>
    %cst_20 = arith.constant dense<0.000000e+00> : vector<1xf32>
    %74 = vector.multi_reduction <add>, %73, %cst_20 [1, 2] : vector<1x8x1xf32> to vector<1xf32>
    %75 = vector.shape_cast %74 : vector<1xf32> to vector<1x1x1xf32>
    %76 = vector.extract %75[0, 0, 0] : f32 from vector<1x1x1xf32>
    %77 = tpu.iota {dimensions = array<i32: 0>} : vector<8x128xi32>
    %c0_i32 = arith.constant 0 : i32
    %78 = vector.broadcast %c0_i32 : i32 to vector<8x128xi32>
    %79 = arith.cmpi eq, %77, %78 : vector<8x128xi32>
    %c1_i32 = arith.constant 1 : i32
    %80 = vector.broadcast %c1_i32 : i32 to vector<8x128xi32>
    %81 = arith.cmpi eq, %77, %80 : vector<8x128xi32>
    %cst_21 = arith.constant 0.000000e+00 : f32
    %82 = vector.broadcast %76 : f32 to vector<8x128xf32>
    %83 = vector.broadcast %cst_21 : f32 to vector<8x128xf32>
    %84 = arith.select %81, %82, %83 : vector<8x128xi1>, vector<8x128xf32>
    %85 = vector.broadcast %72 : f32 to vector<8x128xf32>
    %86 = arith.select %79, %85, %84 : vector<8x128xi1>, vector<8x128xf32>
    %c0_22 = arith.constant 0 : index
    %c0_23 = arith.constant 0 : index
    %c0_24 = arith.constant 0 : index
    %87 = vector.load %arg4[%c0_22, %c0_23, %c0_24] : memref<1x8x128xf32, #tpu.memory_space<vmem>>, vector<1x8x128xf32>
    %88 = vector.shape_cast %87 : vector<1x8x128xf32> to vector<8x128xf32>
    %89 = vector.shape_cast %86 : vector<8x128xf32> to vector<1x8x128xf32>
    tpu.vector_store %arg4[%c0_22, %c0_23, %c0_24], %89 {strides = array<i32>} : memref<1x8x128xf32, #tpu.memory_space<vmem>>, vector<1x8x128xf32>,
    return
  }
  func.func @transform_0(%arg0: i32) -> (i32, i32) {
    %c0_i32 = arith.constant 0 : i32
    %c0_i32_0 = arith.constant 0 : i32
    return %arg0, %c0_i32 : i32, i32
  }
  func.func @transform_1(%arg0: i32) -> (i32, i32) {
    %c0_i32 = arith.constant 0 : i32
    %c0_i32_0 = arith.constant 0 : i32
    return %arg0, %c0_i32 : i32, i32
  }
  func.func @transform_2(%arg0: i32) -> (i32, i32) {
    %c0_i32 = arith.constant 0 : i32
    %c0_i32_0 = arith.constant 0 : i32
    return %arg0, %c0_i32 : i32, i32
  }
  func.func @transform_3(%arg0: i32) -> (i32, i32, i32) {
    %c0_i32 = arith.constant 0 : i32
    %c0_i32_0 = arith.constant 0 : i32
    %c0_i32_1 = arith.constant 0 : i32
    return %arg0, %c0_i32, %c0_i32_0 : i32, i32, i32
  }
}

</mosaic_0001>

<llo_original>
// kernel: tpu_custom_call.1
$region0: #{tpu_custom_call.1}
  #allocation0 [shape = 'u32[]', space=smem, size = 0x4, offset = 0x4, fixed_abs, tag = 'smem constant byte address 0x4 - core index']
  #allocation1 [shape = 'u32[144,128]{1,0:T(1,128)}', space=vmem, size = 0x12000, scoped, tag = 'internal scratch']
  %s0 = inlined_call_operand.vmem [shape: f32[8,16], index: 0, kind: input, shape index: {}]
  %s1 = inlined_call_operand.vmem [shape: s32[8,1], index: 1, kind: input, shape index: {}]
  %s2 = inlined_call_operand.vmem [shape: f32[8,16], index: 2, kind: input, shape index: {}]
  %s3 = inlined_call_operand.hbm [shape: f32[1,8,128], index: 3, kind: output, shape index: {}]
  %s4 = sld [smem:[#allocation0]]
  $region22: #{tpu_custom_call.1} parent=0
    _
  %s6 = ssub.s32 1, %s4
  %s7 = scalar_select 0, %s6, %s4
  $region1: #{tpu_custom_call.1} parent=0
    #allocation2 [shape = 'u8[4096]{0}', space=vmem, size = 0x1000, scoped, tag = 'output window, operand 0, single buffered']
    #allocation3 [shape = 's32[1]{0}', space=sflag, size = 0x4, scoped, tag = 'scoped memory for tpu_custom_call.1']
    %8 = vsyncpa [#allocation3], 0
    // Predicated region
    $region2: #{tpu_custom_call.1} parent=1 // pred_check
      _
    $region3: #{tpu_custom_call.1} parent=1 // pred_check_branch
      %10 = sbr.rel (0) target = $region5
    $region4: #{tpu_custom_call.1} parent=1 // pred_region
      _
    $region5: #{tpu_custom_call.1} parent=1 // pred_fallthru
      _
    // Predicated region
    $region6: #{tpu_custom_call.1} parent=1 // pred_check
      _
    $region7: #{tpu_custom_call.1} parent=1 // pred_check_branch
      %12 = sbr.rel (0) target = $region9
    $region8: #{tpu_custom_call.1} parent=1 // pred_region
      _
    $region9: #{tpu_custom_call.1} parent=1 // pred_fallthru
      _
    // Predicated region
    $region10: #{tpu_custom_call.1} parent=1 // pred_check
      _
    $region11: #{tpu_custom_call.1} parent=1 // pred_check_branch
      %14 = sbr.rel (0) target = $region13
    $region12: #{tpu_custom_call.1} parent=1 // pred_region
      _
    $region13: #{tpu_custom_call.1} parent=1 // pred_fallthru
      _
    %v15 = vld [vmem:[%s0] sm:$0xff]
    %v16 = vld [vmem:[%s2] sm:$0xff]
    %v17 = vld [vmem:[%s1] sm:$0xff]
    %vm18 = vcmp.ne.s32.totalorder %v17, 4294967196
    %v19 = vsel %vm18, 1, 0
    %v20 = vcvt.s32.f32 %v19
    %v21 = vlaneseq
    %v22 = vand.u32 %v21, 127
    %23 = vset.pattern.permute.xlu0 0
    %24 = vperm.xlu0 %23, %v17
    %v25 = vpop.permute.xlu0 %24
    %vm26 = vcmp.eq.s32.totalorder %v22, %v25
    %v27 = vsel %vm26, 1, 0
    %v28 = vcvt.s32.f32 %v27
    %vm29 = vcmask 130048
    %v30 = vsel %vm29, %v15, -inf
    %31 = vmax.xlane.f32.xlu0 %v30
    %v32 = vpop.xlane.xlu0 %31
    %v33 = vsub.f32 %v15, %v32
    %v34 = vmul.f32 %v33, 1.442695
    %v35 = vpow.pop %v34
    %v36 = vsel %vm29, %v35, 0.0
    %37 = vadd.xlane.f32.xlu0 %v36
    %v38 = vpop.xlane.xlu0 %37
    %v39 = vlog2.pop %v38
    %v40 = vmul.f32 %v39, 0.6931472
    %v41 = vadd.f32 %v32, %v40
    %v42 = vmul.f32 %v28, %v15
    %v43 = vsel %vm29, %v42, 0.0
    %44 = vadd.xlane.f32.xlu0 %v43
    %v45 = vpop.xlane.xlu0 %44
    %v46 = vsub.f32 %v41, %v45
    %v47 = vmul.f32 %v46, %v20
    %v48 = vsub.f32 0.0, %v47
    %v49 = vmul.f32 %v48, 1.442695
    %v50 = vpow.pop %v49
    %v51 = vsub.f32 1.0, %v50
    %v52 = vmax.f32 %v51, 0.0
    %v53 = vmul.f32 %v52, %v52
    %v54 = vmul.f32 %v53, %v47
    %v55 = vmul.f32 %v15, 0.25
    %v56 = vmul.f32 %v32, 0.25
    %v57 = vsub.f32 %v55, %v56
    %v58 = vmul.f32 %v57, 1.442695
    %v59 = vpow.pop %v58
    %v60 = vsel %vm29, %v59, 0.0
    %61 = vadd.xlane.f32.xlu0 %v60
    %v62 = vpop.xlane.xlu0 %61
    %v63 = vlog2.pop %v62
    %v64 = vmul.f32 %v63, 0.6931472
    %v65 = vsub.f32 %v57, %v64
    %v66 = vmul.f32 %v16, 0.25
    %v67 = vsel %vm29, %v66, -inf
    %68 = vmax.xlane.f32.xlu0 %v67
    %v69 = vpop.xlane.xlu0 %68
    %v70 = vsub.f32 %v66, %v69
    %v71 = vmul.f32 %v70, 1.442695
    %v72 = vpow.pop %v71
    %v73 = vsel %vm29, %v72, 0.0
    %74 = vadd.xlane.f32.xlu0 %v73
    %v75 = vpop.xlane.xlu0 %74
    %v76 = vlog2.pop %v75
    %v77 = vmul.f32 %v76, 0.6931472
    %v78 = vsub.f32 %v70, %v77
    %v79 = vrcp.pop %v75
    %v80 = vmul.f32 1.0, %v79
    %v81 = vmul.f32 %v72, %v80
    %v82 = vsub.f32 %v78, %v65
    %v83 = vmul.f32 %v81, %v82
    %v84 = vsel %vm29, %v83, 0.0
    %85 = vadd.xlane.f32.xlu0 %v84
    %v86 = vpop.xlane.xlu0 %85
    %vm87 = vcmask 7168
    %v88 = vsel %vm87, %v54, 0.0
    %89 = vadd.xlane.f32.xlu0 %v88
    %v90 = vpop.xlane.xlu0 %89
    %v91 = vrot.slane %v90, 4
    %v92 = vadd.f32 %v90, %v91
    %v93 = vrot.slane %v92, 2
    %v94 = vadd.f32 %v92, %v93
    %v95 = vrot.slane %v94, 1
    %v96 = vadd.f32 %v94, %v95
    %s97 = vtos %v96
    %v98 = vsel %vm87, %v86, 0.0
    %99 = vadd.xlane.f32.xlu0 %v98
    %v100 = vpop.xlane.xlu0 %99
    %v101 = vrot.slane %v100, 4
    %v102 = vadd.f32 %v100, %v101
    %v103 = vrot.slane %v102, 2
    %v104 = vadd.f32 %v102, %v103
    %v105 = vrot.slane %v104, 1
    %v106 = vadd.f32 %v104, %v105
    %s107 = vtos %v106
    %v108 = vlaneseq
    %v109 = vshrl.u32 %v108, 7
    %vm110 = vcmp.eq.s32.totalorder %v109, 0
    %vm111 = vcmp.eq.s32.totalorder %v109, 1
    %v112 = vstv %s107
    %v113 = vsel %vm111, %v112, 0.0
    %v114 = vstv %s97
    %v115 = vsel %vm110, %v114, %v113
    %116 = vst [vmem:[#allocation2] sm:$0xff] %v115
    // Predicated region
    $region14: #{tpu_custom_call.1} parent=1 // pred_check
      _
    $region15: #{tpu_custom_call.1} parent=1 // pred_check_branch
      %118 = sbr.rel (0) target = $region17
    $region16: #{tpu_custom_call.1} parent=1 // pred_region
      %s120 = ssub.s32 128, 128
      %121 = vsyncadd [#allocation3], %s120
      %s123 = sshll.u32 [#allocation2], 4
      %s124 = int_to_ptr.vmem [resolvable:$true] %s123
      %126 = dma.vmem_to_hbm [thread:$0]  %s124, 128, %s3, [#allocation3]
    $region17: #{tpu_custom_call.1} parent=1 // pred_fallthru
      _
    // Predicated region
    $region18: #{tpu_custom_call.1} parent=1 // pred_check
      _
    $region19: #{tpu_custom_call.1} parent=1 // pred_check_branch
      %128 = sbr.rel (0) target = $region21
    $region20: #{tpu_custom_call.1} parent=1 // pred_region
      %129 = dma.done [#allocation3], 128
    $region21: #{tpu_custom_call.1} parent=1 // pred_fallthru
      _
    %130 = vsyncpa [#allocation3], 1

</llo_original>
